<compile_context>
chip_gen: v7x
topology: tpu7x:2x2x1
jax: 0.10.0
libtpu: 0.0.40
codegen_flags: <defaults>
</compile_context>

<pallas_src>
import functools

import jax
import jax.numpy as jnp
from jax import lax
from jax.experimental import pallas as pl
from jax.experimental.pallas import tpu as pltpu


def conv_bn_relu_kernel(x_ref, w_ref, mask_ref, scale_ref, shift_ref, o_ref,
                        *, H, W, Cin, Cout, TN):
    """One grid step = TN images.

    x_ref:     (TN, Cin, H*W)   NCHW input, spatial flattened onto lanes
    w_ref:     (Cout, 9*Cin)    conv weights, tap-major rows (kh, kw, ci)
    mask_ref:  (9, 1, H*W)      halo masks (1.0 inside image, 0.0 in the pad)
    scale_ref: (Cout, 1)        fused BN scale = gamma / sqrt(var + eps)
    shift_ref: (Cout, 1)        fused shift    = (conv_bias - mean)*scale + beta
    o_ref:     (TN, Cout, H*W)  output, spatial flattened onto lanes
    """
    HW = H * W
    wmat = w_ref[...]                              # (Cout, 9*Cin)
    scale = scale_ref[...]                         # (Cout, 1) f32
    shift = shift_ref[...]                         # (Cout, 1) f32
    # Hoist the 9 halo masks out of the loops (shared by all images).
    masks = [mask_ref[k] for k in range(9)]        # each (1, H*W)

    for n in range(TN):                            # static, unrolled
        xn = x_ref[n]                              # (Cin, H*W)

        # im2col: for each of the 9 taps, shift the flattened image by
        # (dh*W + dw) along the lane axis and zero positions whose source
        # lies in the zero-padding halo.
        taps = []
        for kh in range(3):
            for kw in range(3):
                s = (kh - 1) * W + (kw - 1)
                rolled = xn if s == 0 else pltpu.roll(xn, shift=(-s) % HW, axis=1)
                taps.append(rolled * masks[kh * 3 + kw])
        patches = jnp.concatenate(taps, axis=0)    # (9*Cin, H*W)

        # Single MXU contraction over K = 9*Cin (instead of 9 dots with K=Cin),
        # with f32 accumulation.
        acc = jnp.dot(wmat, patches, preferred_element_type=jnp.float32)

        # Fused conv-bias + BatchNorm (running stats) + ReLU.
        y = jnp.maximum(acc * scale + shift, 0.0)  # (Cout, H*W)
        o_ref[n] = y.astype(o_ref.dtype)           # lane-dense (>=128 wide) store


def conv_bn_relu(x_nchw, weight_oihw, bias, gamma, beta, running_mean,
                 running_var, eps=1e-5, batch_tile=None):
    """relu(batch_norm(conv2d(x, W, b), running stats)) — NCHW in, NCHW out."""
    N, Cin, H, W = x_nchw.shape
    Cout = weight_oihw.shape[0]
    HW = H * W

    # Free contiguous reshape: flattened spatial axis goes onto the lanes.
    x_flat = x_nchw.reshape(N, Cin, HW)

    # (Cout, Cin, 3, 3) -> (Cout, kh, kw, Cin) -> (Cout, 9*Cin).  Row order must
    # match the tap order used by the kernel when building the patch matrix.
    wmat = jnp.transpose(weight_oihw, (0, 2, 3, 1)).reshape(Cout, 9 * Cin)
    wmat = wmat.astype(x_nchw.dtype)          # keep weights in the activation dtype

    # Halo masks for the 9 taps: 1.0 where (h+dh, w+dw) lies inside the image.
    hh = jnp.arange(H)
    ww = jnp.arange(W)
    masks = []
    for kh in range(3):
        dh = kh - 1
        row_ok = (hh + dh >= 0) & (hh + dh < H)
        for kw in range(3):
            dw = kw - 1
            col_ok = (ww + dw >= 0) & (ww + dw < W)
            masks.append((row_ok[:, None] & col_ok[None, :]).reshape(HW))
    tap_mask = jnp.stack(masks).astype(x_nchw.dtype).reshape(9, 1, HW)

    # Fold conv bias + eval-mode BN into a per-channel affine (f32).
    scale = (gamma / jnp.sqrt(running_var + eps)).astype(jnp.float32)
    shift = ((bias - running_mean) * scale + beta).astype(jnp.float32)
    scale2 = scale.reshape(Cout, 1)
    shift2 = shift.reshape(Cout, 1)

    # Batch tiling: merge images per grid step to amortise per-step pipeline
    # overhead, but keep >=2 grid steps when possible so the (parallel) batch
    # axis can still shard across v7x's two TensorCores.
    if batch_tile is None:
        batch_tile = max(1, N // 2)
    while N % batch_tile:
        batch_tile -= 1
    TN = batch_tile

    kernel = functools.partial(conv_bn_relu_kernel,
                               H=H, W=W, Cin=Cin, Cout=Cout, TN=TN)

    out_flat = pl.pallas_call(
        kernel,
        out_shape=jax.ShapeDtypeStruct((N, Cout, HW), x_nchw.dtype),
        grid_spec=pltpu.PrefetchScalarGridSpec(
            num_scalar_prefetch=0,
            grid=(N // TN,),
            in_specs=[
                pl.BlockSpec((TN, Cin, HW), lambda b: (b, 0, 0)),
                pl.BlockSpec((Cout, 9 * Cin), lambda b: (0, 0)),
                pl.BlockSpec((9, 1, HW), lambda b: (0, 0, 0)),
                pl.BlockSpec((Cout, 1), lambda b: (0, 0)),
                pl.BlockSpec((Cout, 1), lambda b: (0, 0)),
            ],
            out_specs=pl.BlockSpec((TN, Cout, HW), lambda b: (b, 0, 0)),
        ),
        compiler_params=pltpu.CompilerParams(
            dimension_semantics=("parallel",)),
    )(x_flat, wmat, tap_mask, scale2, shift2)

    # Free contiguous reshape back to NCHW (no transpose needed).
    return out_flat.reshape(N, Cout, H, W)


def _reference(x, weight, bias, gamma, beta, running_mean, running_var, eps=1e-5):
    y = lax.conv_general_dilated(
        x.astype(jnp.float32), weight.astype(jnp.float32),
        window_strides=(1, 1), padding=((1, 1), (1, 1)),
        dimension_numbers=("NCHW", "OIHW", "NCHW"),
        precision=lax.Precision.HIGHEST)
    y = y + bias[None, :, None, None]
    y = (y - running_mean[None, :, None, None]) / jnp.sqrt(
        running_var[None, :, None, None] + eps)
    y = y * gamma[None, :, None, None] + beta[None, :, None, None]
    return jnp.maximum(y, 0.0)


if __name__ == "__main__":
    key = jax.random.PRNGKey(0)
    N, Cin, H, W, Cout = 2, 4, 16, 16, 8

    k = jax.random.split(key, 7)
    x = jax.random.normal(k[0], (N, Cin, H, W), jnp.float32)
    weight = jax.random.normal(k[1], (Cout, Cin, 3, 3), jnp.float32) * 0.1
    bias = jax.random.normal(k[2], (Cout,), jnp.float32) * 0.1
    gamma = 1.0 + 0.1 * jax.random.normal(k[3], (Cout,), jnp.float32)
    beta = 0.1 * jax.random.normal(k[4], (Cout,), jnp.float32)
    running_mean = 0.1 * jax.random.normal(k[5], (Cout,), jnp.float32)
    running_var = jnp.abs(jax.random.normal(k[6], (Cout,), jnp.float32)) + 0.5

    out = conv_bn_relu(x, weight, bias, gamma, beta, running_mean, running_var)
    out = jax.block_until_ready(out)

    ref = _reference(x, weight, bias, gamma, beta, running_mean, running_var)
    assert out.shape == (N, Cout, H, W)
    err = float(jnp.max(jnp.abs(out - ref)))
    assert err < 2e-3, f"mismatch vs reference conv: max abs err = {err}"

    print("KERNEL_OK")
</pallas_src>

<mosaic_0001>
module attributes {stable_mosaic.version = 11 : i64} {
  func.func @conv_bn_relu_kernel(%arg0: i32, %arg1: memref<1x4x256xf32, #tpu.memory_space<vmem>>, %arg2: memref<8x36xf32, #tpu.memory_space<vmem>>, %arg3: memref<9x1x256xf32, #tpu.memory_space<vmem>>, %arg4: memref<8x1xf32, #tpu.memory_space<vmem>>, %arg5: memref<8x1xf32, #tpu.memory_space<vmem>>, %arg6: memref<1x8x256xf32, #tpu.memory_space<vmem>>) attributes {dimension_semantics = [#tpu.dimension_semantics<parallel>], iteration_bounds = array<i64: 2>, scalar_prefetch = 0 : i64, scratch_operands = 0 : i64, tpu.core_type = #tpu.core_type<tc>, window_params = [{transform_indices = @transform_0, window_bounds = array<i64: 1, 4, 256>}, {pipeline_mode = #tpu.pipeline_mode<synchronous>, transform_indices = @transform_1, window_bounds = array<i64: 8, 36>}, {pipeline_mode = #tpu.pipeline_mode<synchronous>, transform_indices = @transform_2, window_bounds = array<i64: 9, 1, 256>}, {pipeline_mode = #tpu.pipeline_mode<synchronous>, transform_indices = @transform_3, window_bounds = array<i64: 8, 1>}, {pipeline_mode = #tpu.pipeline_mode<synchronous>, transform_indices = @transform_4, window_bounds = array<i64: 8, 1>}, {transform_indices = @transform_5, window_bounds = array<i64: 1, 8, 256>}]} {
    %c0 = arith.constant 0 : index
    %c0_0 = arith.constant 0 : index
    %0 = vector.load %arg2[%c0, %c0_0] : memref<8x36xf32, #tpu.memory_space<vmem>>, vector<8x36xf32>
    %c0_1 = arith.constant 0 : index
    %c0_2 = arith.constant 0 : index
    %1 = vector.load %arg4[%c0_1, %c0_2] : memref<8x1xf32, #tpu.memory_space<vmem>>, vector<8x1xf32>
    %c0_3 = arith.constant 0 : index
    %c0_4 = arith.constant 0 : index
    %2 = vector.load %arg5[%c0_3, %c0_4] : memref<8x1xf32, #tpu.memory_space<vmem>>, vector<8x1xf32>
    %c0_5 = arith.constant 0 : index
    %c0_6 = arith.constant 0 : index
    %c0_7 = arith.constant 0 : index
    %3 = vector.load %arg3[%c0_5, %c0_6, %c0_7] : memref<9x1x256xf32, #tpu.memory_space<vmem>>, vector<1x1x256xf32>
    %4 = vector.shape_cast %3 : vector<1x1x256xf32> to vector<1x256xf32>
    %c1 = arith.constant 1 : index
    %c0_8 = arith.constant 0 : index
    %c0_9 = arith.constant 0 : index
    %5 = vector.load %arg3[%c1, %c0_8, %c0_9] : memref<9x1x256xf32, #tpu.memory_space<vmem>>, vector<1x1x256xf32>
    %6 = vector.shape_cast %5 : vector<1x1x256xf32> to vector<1x256xf32>
    %c2 = arith.constant 2 : index
    %c0_10 = arith.constant 0 : index
    %c0_11 = arith.constant 0 : index
    %7 = vector.load %arg3[%c2, %c0_10, %c0_11] : memref<9x1x256xf32, #tpu.memory_space<vmem>>, vector<1x1x256xf32>
    %8 = vector.shape_cast %7 : vector<1x1x256xf32> to vector<1x256xf32>
    %c3 = arith.constant 3 : index
    %c0_12 = arith.constant 0 : index
    %c0_13 = arith.constant 0 : index
    %9 = vector.load %arg3[%c3, %c0_12, %c0_13] : memref<9x1x256xf32, #tpu.memory_space<vmem>>, vector<1x1x256xf32>
    %10 = vector.shape_cast %9 : vector<1x1x256xf32> to vector<1x256xf32>
    %c4 = arith.constant 4 : index
    %c0_14 = arith.constant 0 : index
    %c0_15 = arith.constant 0 : index
    %11 = vector.load %arg3[%c4, %c0_14, %c0_15] : memref<9x1x256xf32, #tpu.memory_space<vmem>>, vector<1x1x256xf32>
    %12 = vector.shape_cast %11 : vector<1x1x256xf32> to vector<1x256xf32>
    %c5 = arith.constant 5 : index
    %c0_16 = arith.constant 0 : index
    %c0_17 = arith.constant 0 : index
    %13 = vector.load %arg3[%c5, %c0_16, %c0_17] : memref<9x1x256xf32, #tpu.memory_space<vmem>>, vector<1x1x256xf32>
    %14 = vector.shape_cast %13 : vector<1x1x256xf32> to vector<1x256xf32>
    %c6 = arith.constant 6 : index
    %c0_18 = arith.constant 0 : index
    %c0_19 = arith.constant 0 : index
    %15 = vector.load %arg3[%c6, %c0_18, %c0_19] : memref<9x1x256xf32, #tpu.memory_space<vmem>>, vector<1x1x256xf32>
    %16 = vector.shape_cast %15 : vector<1x1x256xf32> to vector<1x256xf32>
    %c7 = arith.constant 7 : index
    %c0_20 = arith.constant 0 : index
    %c0_21 = arith.constant 0 : index
    %17 = vector.load %arg3[%c7, %c0_20, %c0_21] : memref<9x1x256xf32, #tpu.memory_space<vmem>>, vector<1x1x256xf32>
    %18 = vector.shape_cast %17 : vector<1x1x256xf32> to vector<1x256xf32>
    %c8 = arith.constant 8 : index
    %c0_22 = arith.constant 0 : index
    %c0_23 = arith.constant 0 : index
    %19 = vector.load %arg3[%c8, %c0_22, %c0_23] : memref<9x1x256xf32, #tpu.memory_space<vmem>>, vector<1x1x256xf32>
    %20 = vector.shape_cast %19 : vector<1x1x256xf32> to vector<1x256xf32>
    %c0_24 = arith.constant 0 : index
    %c0_25 = arith.constant 0 : index
    %c0_26 = arith.constant 0 : index
    %21 = vector.load %arg1[%c0_24, %c0_25, %c0_26] : memref<1x4x256xf32, #tpu.memory_space<vmem>>, vector<1x4x256xf32>
    %22 = vector.shape_cast %21 : vector<1x4x256xf32> to vector<4x256xf32>
    %c17_i32 = arith.constant 17 : i32
    %23 = tpu.dynamic_rotate %22 by %c17_i32 dim 1 : vector<4x256xf32>, i32 -> vector<4x256xf32>
    %24 = vector.broadcast %4 : vector<1x256xf32> to vector<4x256xf32>
    %25 = arith.mulf %23, %24 : vector<4x256xf32>
    %c16_i32 = arith.constant 16 : i32
    %26 = tpu.dynamic_rotate %22 by %c16_i32 dim 1 : vector<4x256xf32>, i32 -> vector<4x256xf32>
    %27 = vector.broadcast %6 : vector<1x256xf32> to vector<4x256xf32>
    %28 = arith.mulf %26, %27 : vector<4x256xf32>
    %c15_i32 = arith.constant 15 : i32
    %29 = tpu.dynamic_rotate %22 by %c15_i32 dim 1 : vector<4x256xf32>, i32 -> vector<4x256xf32>
    %30 = vector.broadcast %8 : vector<1x256xf32> to vector<4x256xf32>
    %31 = arith.mulf %29, %30 : vector<4x256xf32>
    %c1_i32 = arith.constant 1 : i32
    %32 = tpu.dynamic_rotate %22 by %c1_i32 dim 1 : vector<4x256xf32>, i32 -> vector<4x256xf32>
    %33 = vector.broadcast %10 : vector<1x256xf32> to vector<4x256xf32>
    %34 = arith.mulf %32, %33 : vector<4x256xf32>
    %35 = vector.broadcast %12 : vector<1x256xf32> to vector<4x256xf32>
    %36 = arith.mulf %22, %35 : vector<4x256xf32>
    %c255_i32 = arith.constant 255 : i32
    %37 = tpu.dynamic_rotate %22 by %c255_i32 dim 1 : vector<4x256xf32>, i32 -> vector<4x256xf32>
    %38 = vector.broadcast %14 : vector<1x256xf32> to vector<4x256xf32>
    %39 = arith.mulf %37, %38 : vector<4x256xf32>
    %c241_i32 = arith.constant 241 : i32
    %40 = tpu.dynamic_rotate %22 by %c241_i32 dim 1 : vector<4x256xf32>, i32 -> vector<4x256xf32>
    %41 = vector.broadcast %16 : vector<1x256xf32> to vector<4x256xf32>
    %42 = arith.mulf %40, %41 : vector<4x256xf32>
    %c240_i32 = arith.constant 240 : i32
    %43 = tpu.dynamic_rotate %22 by %c240_i32 dim 1 : vector<4x256xf32>, i32 -> vector<4x256xf32>
    %44 = vector.broadcast %18 : vector<1x256xf32> to vector<4x256xf32>
    %45 = arith.mulf %43, %44 : vector<4x256xf32>
    %c239_i32 = arith.constant 239 : i32
    %46 = tpu.dynamic_rotate %22 by %c239_i32 dim 1 : vector<4x256xf32>, i32 -> vector<4x256xf32>
    %47 = vector.broadcast %20 : vector<1x256xf32> to vector<4x256xf32>
    %48 = arith.mulf %46, %47 : vector<4x256xf32>
    %49 = tpu.concatenate %25, %28, %31, %34, %36, %39, %42, %45, %48 in 0 : vector<4x256xf32>, vector<4x256xf32>, vector<4x256xf32>, vector<4x256xf32>, vector<4x256xf32>, vector<4x256xf32>, vector<4x256xf32>, vector<4x256xf32>, vector<4x256xf32> -> vector<36x256xf32>
    %cst = arith.constant dense<0.000000e+00> : vector<8x256xf32>
    %50 = tpu.matmul %0, %49, %cst {dimension_numbers = #tpu.dot_dimension_numbers<[1], [0], [0], [1], [0, 0, 1, 1], [], []>} : vector<8x36xf32>, vector<36x256xf32>, vector<8x256xf32> -> vector<8x256xf32>
    %51 = vector.broadcast %1 : vector<8x1xf32> to vector<8x256xf32>
    %52 = arith.mulf %50, %51 : vector<8x256xf32>
    %53 = vector.broadcast %2 : vector<8x1xf32> to vector<8x256xf32>
    %54 = arith.addf %52, %53 : vector<8x256xf32>
    %cst_27 = arith.constant 0.000000e+00 : f32
    %55 = vector.broadcast %cst_27 : f32 to vector<8x256xf32>
    %56 = arith.maximumf %54, %55 : vector<8x256xf32>
    %c0_28 = arith.constant 0 : index
    %c0_29 = arith.constant 0 : index
    %c0_30 = arith.constant 0 : index
    %57 = vector.load %arg6[%c0_28, %c0_29, %c0_30] : memref<1x8x256xf32, #tpu.memory_space<vmem>>, vector<1x8x256xf32>
    %58 = vector.shape_cast %57 : vector<1x8x256xf32> to vector<8x256xf32>
    %59 = vector.shape_cast %56 : vector<8x256xf32> to vector<1x8x256xf32>
    tpu.vector_store %arg6[%c0_28, %c0_29, %c0_30], %59 {strides = array<i32>} : memref<1x8x256xf32, #tpu.memory_space<vmem>>, vector<1x8x256xf32>,
    return
  }
  func.func @transform_0(%arg0: i32) -> (i32, i32, i32) {
    %c0_i32 = arith.constant 0 : i32
    %c0_i32_0 = arith.constant 0 : i32
    %c0_i32_1 = arith.constant 0 : i32
    return %arg0, %c0_i32, %c0_i32_0 : i32, i32, i32
  }
  func.func @transform_1(%arg0: i32) -> (i32, i32) {
    %c0_i32 = arith.constant 0 : i32
    %c0_i32_0 = arith.constant 0 : i32
    %c0_i32_1 = arith.constant 0 : i32
    return %c0_i32, %c0_i32_0 : i32, i32
  }
  func.func @transform_2(%arg0: i32) -> (i32, i32, i32) {
    %c0_i32 = arith.constant 0 : i32
    %c0_i32_0 = arith.constant 0 : i32
    %c0_i32_1 = arith.constant 0 : i32
    %c0_i32_2 = arith.constant 0 : i32
    return %c0_i32, %c0_i32_0, %c0_i32_1 : i32, i32, i32
  }
  func.func @transform_3(%arg0: i32) -> (i32, i32) {
    %c0_i32 = arith.constant 0 : i32
    %c0_i32_0 = arith.constant 0 : i32
    %c0_i32_1 = arith.constant 0 : i32
    return %c0_i32, %c0_i32_0 : i32, i32
  }
  func.func @transform_4(%arg0: i32) -> (i32, i32) {
    %c0_i32 = arith.constant 0 : i32
    %c0_i32_0 = arith.constant 0 : i32
    %c0_i32_1 = arith.constant 0 : i32
    return %c0_i32, %c0_i32_0 : i32, i32
  }
  func.func @transform_5(%arg0: i32) -> (i32, i32, i32) {
    %c0_i32 = arith.constant 0 : i32
    %c0_i32_0 = arith.constant 0 : i32
    %c0_i32_1 = arith.constant 0 : i32
    return %arg0, %c0_i32, %c0_i32_0 : i32, i32, i32
  }
}

</mosaic_0001>

<llo_original>
// kernel: tpu_custom_call.1
$region0: #{tpu_custom_call.1}
  #allocation0 [shape = 'u32[]', space=smem, size = 0x4, offset = 0x4, fixed_abs, tag = 'smem constant byte address 0x4 - core index']
  #allocation1 [shape = 'u32[144,128]{1,0:T(1,128)}', space=vmem, size = 0x12000, scoped, tag = 'internal scratch']
  %s0 = inlined_call_operand.hbm [shape: f32[2,4,256], index: 0, kind: input, shape index: {}]
  %s1 = inlined_call_operand.hbm [shape: f32[8,36], index: 1, kind: input, shape index: {}]
  %s2 = inlined_call_operand.vmem [shape: f32[9,1,256], index: 2, kind: input, shape index: {}]
  %s3 = inlined_call_operand.vmem [shape: f32[8,1], index: 3, kind: input, shape index: {}]
  %s4 = inlined_call_operand.vmem [shape: f32[8,1], index: 4, kind: input, shape index: {}]
  %s5 = inlined_call_operand.hbm [shape: f32[2,8,256], index: 5, kind: output, shape index: {}]
  %s6 = sld [smem:[#allocation0]]
  $region61: #{tpu_custom_call.1} parent=0
    _
  %s8 = ssub.s32 1, %s6
  %s9 = scalar_select 0, %s8, %s6
  $region1: #{tpu_custom_call.1} parent=0
    #allocation2 [shape = 'u8[8192]{0}', space=vmem, size = 0x2000, scoped, tag = 'input window, operand 0']
    #allocation3 [shape = 's32[2]{0}', space=sflag, size = 0x8, scoped, tag = 'scoped memory for tpu_custom_call.1']
    #allocation4 [shape = 's32[2]{0}', space=sflag, size = 0x8, scoped, tag = 'scoped memory for tpu_custom_call.1']
    #allocation5 [shape = 'u8[4096]{0}', space=vmem, size = 0x1000, scoped, tag = 'input window, operand 1, single buffered']
    #allocation6 [shape = 's32[1]{0}', space=sflag, size = 0x4, scoped, tag = 'scoped memory for tpu_custom_call.1']
    #allocation7 [shape = 'u8[16384]{0}', space=vmem, size = 0x4000, scoped, tag = 'output window, operand 0']
    %10 = vsyncpa [#allocation3], 0
    %s11 = scalar_lea.sflag [#allocation3], 1
    %12 = vsyncpa %s11, 0
    %13 = vsyncpa [#allocation6], 0
    %14 = vsyncpa [#allocation4], 0
    %s15 = scalar_lea.sflag [#allocation4], 1
    %16 = vsyncpa %s15, 0
    loop: start=0, step=1, limit=4
    $region2: #{tpu_custom_call.1} parent=1 // loop_pre_header
      _
    $region3: #{tpu_custom_call.1} parent=1 // loop_header
      %s18 = sphi 0, %s22
      %p19 = scmp.ge.s32.totalorder %s18, 4
      %s28 = sphi 0, %s30
      %s31 = sphi 0, %s28
      %s32 = sphi 0, %s31
      %s48 = sphi 0, %s32
      %s52 = sphi 0, %s52
      %s54 = sphi 0, %s52
      %s55 = sphi 0, %s54
      %s69 = sphi 0, %s55
      %s73 = sphi 0, %s73
      %s75 = sphi 0, %s73
      %s76 = sphi 0, %s75
      %s90 = sphi 0, %s76
      %s94 = sphi 0, %s94
      %s96 = sphi 0, %s94
      %s97 = sphi 0, %s96
      %s111 = sphi 0, %s97
      %s115 = sphi 0, %s115
      %s117 = sphi 0, %s115
      %s118 = sphi 0, %s117
      %s132 = sphi 0, %s118
      %s138 = sphi 0, %s140
      %s141 = sphi 0, %s138
      %s142 = sphi 0, %s141
      %s158 = sphi 0, %s142
    $region4: #{tpu_custom_call.1} parent=1 // loop_header_branch
      %21 = sbr.rel (%p19) target = $region8
    $region5: #{tpu_custom_call.1} parent=1 // loop_body
      %s23 = ssub.s32 %s18, 1
      %s24 = ssub.s32 %s18, 2
      %s25 = sadd.s32 %s18, 1
      %s26 = ssub.s32 %s18, %s25
      %p27 = scmp.eq.s32.totalorder %s26, 0
      %s29 = sadd.s32 %s28, 1
      %s30 = scalar_select %p27, %s28, %s29
      %p33 = pneg %p27
      %p34 = scmp.eq.s32.totalorder %s18, 1
      %p35 = por %p33, %p34
      %p36 = scmp.ne.s32.totalorder %s28, %s31
      %p37 = scmp.eq.s32.totalorder %s18, 0
      %p38 = por %p36, %p37
      %p39 = scmp.ne.s32.totalorder %s28, %s31
      %p40 = scmp.eq.s32.totalorder %s23, 1
      %p41 = por %p39, %p40
      %p42 = scmp.ne.s32.totalorder %s31, %s32
      %p43 = scmp.eq.s32.totalorder %s23, 0
      %p44 = por %p42, %p43
      %p45 = scmp.ne.s32.totalorder %s31, %s32
      %p46 = scmp.eq.s32.totalorder %s24, 1
      %p47 = por %p45, %p46
      %p49 = scmp.ne.s32.totalorder %s32, %s48
      %p50 = scmp.eq.s32.totalorder %s24, 0
      %p51 = por %p49, %p50
      %s53 = sadd.s32 %s52, 1
      %p56 = scmp.eq.s32.totalorder %s18, 1
      %p57 = scmp.ne.s32.totalorder %s52, %s54
      %p58 = scmp.eq.s32.totalorder %s18, 0
      %p59 = por %p57, %p58
      %p60 = scmp.ne.s32.totalorder %s52, %s54
      %p61 = scmp.eq.s32.totalorder %s23, 1
      %p62 = por %p60, %p61
      %p63 = scmp.ne.s32.totalorder %s54, %s55
      %p64 = scmp.eq.s32.totalorder %s23, 0
      %p65 = por %p63, %p64
      %p66 = scmp.ne.s32.totalorder %s54, %s55
      %p67 = scmp.eq.s32.totalorder %s24, 1
      %p68 = por %p66, %p67
      %p70 = scmp.ne.s32.totalorder %s55, %s69
      %p71 = scmp.eq.s32.totalorder %s24, 0
      %p72 = por %p70, %p71
      %s74 = sadd.s32 %s73, 1
      %p77 = scmp.eq.s32.totalorder %s18, 1
      %p78 = scmp.ne.s32.totalorder %s73, %s75
      %p79 = scmp.eq.s32.totalorder %s18, 0
      %p80 = por %p78, %p79
      %p81 = scmp.ne.s32.totalorder %s73, %s75
      %p82 = scmp.eq.s32.totalorder %s23, 1
      %p83 = por %p81, %p82
      %p84 = scmp.ne.s32.totalorder %s75, %s76
      %p85 = scmp.eq.s32.totalorder %s23, 0
      %p86 = por %p84, %p85
      %p87 = scmp.ne.s32.totalorder %s75, %s76
      %p88 = scmp.eq.s32.totalorder %s24, 1
      %p89 = por %p87, %p88
      %p91 = scmp.ne.s32.totalorder %s76, %s90
      %p92 = scmp.eq.s32.totalorder %s24, 0
      %p93 = por %p91, %p92
      %s95 = sadd.s32 %s94, 1
      %p98 = scmp.eq.s32.totalorder %s18, 1
      %p99 = scmp.ne.s32.totalorder %s94, %s96
      %p100 = scmp.eq.s32.totalorder %s18, 0
      %p101 = por %p99, %p100
      %p102 = scmp.ne.s32.totalorder %s94, %s96
      %p103 = scmp.eq.s32.totalorder %s23, 1
      %p104 = por %p102, %p103
      %p105 = scmp.ne.s32.totalorder %s96, %s97
      %p106 = scmp.eq.s32.totalorder %s23, 0
      %p107 = por %p105, %p106
      %p108 = scmp.ne.s32.totalorder %s96, %s97
      %p109 = scmp.eq.s32.totalorder %s24, 1
      %p110 = por %p108, %p109
      %p112 = scmp.ne.s32.totalorder %s97, %s111
      %p113 = scmp.eq.s32.totalorder %s24, 0
      %p114 = por %p112, %p113
      %s116 = sadd.s32 %s115, 1
      %p119 = scmp.eq.s32.totalorder %s18, 1
      %p120 = scmp.ne.s32.totalorder %s115, %s117
      %p121 = scmp.eq.s32.totalorder %s18, 0
      %p122 = por %p120, %p121
      %p123 = scmp.ne.s32.totalorder %s115, %s117
      %p124 = scmp.eq.s32.totalorder %s23, 1
      %p125 = por %p123, %p124
      %p126 = scmp.ne.s32.totalorder %s117, %s118
      %p127 = scmp.eq.s32.totalorder %s23, 0
      %p128 = por %p126, %p127
      %p129 = scmp.ne.s32.totalorder %s117, %s118
      %p130 = scmp.eq.s32.totalorder %s24, 1
      %p131 = por %p129, %p130
      %p133 = scmp.ne.s32.totalorder %s118, %s132
      %p134 = scmp.eq.s32.totalorder %s24, 0
      %p135 = por %p133, %p134
      %s136 = ssub.s32 %s18, %s25
      %p137 = scmp.eq.s32.totalorder %s136, 0
      %s139 = sadd.s32 %s138, 1
      %s140 = scalar_select %p137, %s138, %s139
      %p143 = pneg %p137
      %p144 = scmp.eq.s32.totalorder %s18, 1
      %p145 = por %p143, %p144
      %p146 = scmp.ne.s32.totalorder %s138, %s141
      %p147 = scmp.eq.s32.totalorder %s18, 0
      %p148 = por %p146, %p147
      %p149 = scmp.ne.s32.totalorder %s138, %s141
      %p150 = scmp.eq.s32.totalorder %s23, 1
      %p151 = por %p149, %p150
      %p152 = scmp.ne.s32.totalorder %s141, %s142
      %p153 = scmp.eq.s32.totalorder %s23, 0
      %p154 = por %p152, %p153
      %p155 = scmp.ne.s32.totalorder %s141, %s142
      %p156 = scmp.eq.s32.totalorder %s24, 1
      %p157 = por %p155, %p156
      %p159 = scmp.ne.s32.totalorder %s142, %s158
      %p160 = scmp.eq.s32.totalorder %s24, 0
      %p161 = por %p159, %p160
      %p162 = scmp.le.s32.totalorder 1, %s18
      %p163 = scmp.lt.s32.totalorder %s18, 3
      %p164 = pnand %p162, %p163
      %p165 = pneg %p164
      // Predicated region
      $region9: #{tpu_custom_call.1} parent=5 // pred_check
        _
      $region10: #{tpu_custom_call.1} parent=5 // pred_check_branch
        %167 = sbr.rel (%p164) target = $region12
      $region11: #{tpu_custom_call.1} parent=5 // pred_region
        %s168 = ssub.s32 %s18, 1
        // Predicated region
        $region13: #{tpu_custom_call.1} parent=11 // pred_check
          %p169 = pneg %p65
        $region14: #{tpu_custom_call.1} parent=11 // pred_check_branch
          %171 = sbr.rel (%p169) target = $region16
        $region15: #{tpu_custom_call.1} parent=11 // pred_region
          %s173 = ssub.s32 128, 128
          %174 = vsyncadd [#allocation6], %s173
          %s176 = sshll.u32 [#allocation5], 4
          %s177 = int_to_ptr.vmem [resolvable:$true] %s176
          %179 = dma.hbm_to_vmem [thread:$0]  %s1, 128, %s177, [#allocation6]
        $region16: #{tpu_custom_call.1} parent=11 // pred_fallthru
          _
        // Predicated region
        $region17: #{tpu_custom_call.1} parent=11 // pred_check
          %p180 = pneg %p86
        $region18: #{tpu_custom_call.1} parent=11 // pred_check_branch
          %182 = sbr.rel (%p180) target = $region20
        $region19: #{tpu_custom_call.1} parent=11 // pred_region
          _
        $region20: #{tpu_custom_call.1} parent=11 // pred_fallthru
          _
        // Predicated region
        $region21: #{tpu_custom_call.1} parent=11 // pred_check
          %p183 = pneg %p107
        $region22: #{tpu_custom_call.1} parent=11 // pred_check_branch
          %185 = sbr.rel (%p183) target = $region24
        $region23: #{tpu_custom_call.1} parent=11 // pred_region
          _
        $region24: #{tpu_custom_call.1} parent=11 // pred_fallthru
          _
        // Predicated region
        $region25: #{tpu_custom_call.1} parent=11 // pred_check
          %p186 = pneg %p128
        $region26: #{tpu_custom_call.1} parent=11 // pred_check_branch
          %188 = sbr.rel (%p186) target = $region28
        $region27: #{tpu_custom_call.1} parent=11 // pred_region
          _
        $region28: #{tpu_custom_call.1} parent=11 // pred_fallthru
          _
      $region12: #{tpu_custom_call.1} parent=5 // pred_fallthru
        _
      %p189 = scmp.lt.s32.totalorder %s18, 2
      // Predicated region
      $region29: #{tpu_custom_call.1} parent=5 // pred_check
        %p190 = pneg %p189
      $region30: #{tpu_custom_call.1} parent=5 // pred_check_branch
        %192 = sbr.rel (%p190) target = $region32
      $region31: #{tpu_custom_call.1} parent=5 // pred_region
        // Predicated region
        $region33: #{tpu_custom_call.1} parent=31 // pred_check
          %p193 = pneg %p38
        $region34: #{tpu_custom_call.1} parent=31 // pred_check_branch
          %195 = sbr.rel (%p193) target = $region36
        $region35: #{tpu_custom_call.1} parent=31 // pred_region
          %s196 = sand.u32 %s28, 1
          %s197 = scalar_lea.sflag [#allocation3], %s196
          %s198 = sand.u32 %s28, 1
          %s199 = smul.addr %s198, 8
          %s200 = scalar_lea.vmem [#allocation2], %s199
          %s202 = ssub.s32 128, 128
          %203 = vsyncadd %s197, %s202
          %s204 = smul.addr %s18, 2
          %s205 = smul.addr %s204, 64
          %s206 = scalar_lea.hbm %s0, %s205
          %s208 = sshll.u32 %s200, 4
          %s209 = int_to_ptr.vmem [resolvable:$true] %s208
          %211 = dma.hbm_to_vmem [thread:$0]  %s206, 128, %s209, %s197
        $region36: #{tpu_custom_call.1} parent=31 // pred_fallthru
          _
      $region32: #{tpu_custom_call.1} parent=5 // pred_fallthru
        _
      %p212 = scmp.le.s32.totalorder 1, %s18
      %p213 = scmp.lt.s32.totalorder %s18, 3
      %p214 = pnand %p212, %p213
      %p215 = pneg %p214
      // Predicated region
      $region37: #{tpu_custom_call.1} parent=5 // pred_check
        _
      $region38: #{tpu_custom_call.1} parent=5 // pred_check_branch
        %217 = sbr.rel (%p214) target = $region40
      $region39: #{tpu_custom_call.1} parent=5 // pred_region
        %s218 = ssub.s32 %s18, 1
        %s219 = sand.u32 %s31, 1
        %s220 = scalar_lea.sflag [#allocation3], %s219
        %s221 = sand.u32 %s31, 1
        %s222 = smul.addr %s221, 8
        %s223 = scalar_lea.vmem [#allocation2], %s222
        // Predicated region
        $region41: #{tpu_custom_call.1} parent=39 // pred_check
          %p224 = pneg %p44
        $region42: #{tpu_custom_call.1} parent=39 // pred_check_branch
          %226 = sbr.rel (%p224) target = $region44
        $region43: #{tpu_custom_call.1} parent=39 // pred_region
          %227 = dma.done %s220, 128
        $region44: #{tpu_custom_call.1} parent=39 // pred_fallthru
          _
        // Predicated region
        $region45: #{tpu_custom_call.1} parent=39 // pred_check
          %p228 = pneg %p65
        $region46: #{tpu_custom_call.1} parent=39 // pred_check_branch
          %230 = sbr.rel (%p228) target = $region48
        $region47: #{tpu_custom_call.1} parent=39 // pred_region
          %231 = dma.done [#allocation6], 128
        $region48: #{tpu_custom_call.1} parent=39 // pred_fallthru
          _
        %s232 = sand.u32 %s31, 1
        %s233 = scalar_lea.sflag [#allocation3], %s232
        %s234 = sand.u32 %s31, 1
        %s235 = smul.addr %s234, 8
        %s236 = scalar_lea.vmem [#allocation2], %s235
        %p237 = pneg %p44
        %p238 = pneg %p41
        %p239 = pneg %p65
        %p240 = pneg %p62
        %p241 = pneg %p86
        %p242 = pneg %p83
        %p243 = pneg %p107
        %p244 = pneg %p104
        %p245 = pneg %p128
        %p246 = pneg %p125
        %p247 = pneg %p154
        %p248 = pneg %p151
        %s249 = sand.u32 %s141, 1
        %s250 = scalar_lea.sflag [#allocation4], %s249
        %s251 = sand.u32 %s141, 1
        %s252 = smul.addr %s251, 16
        %s253 = scalar_lea.vmem [#allocation7], %s252
        %v254 = vld [vmem:[#allocation5] sm:$0xff]
        %v255 = vld [vmem:[%s3] sm:$0xff]
        %v256 = vld [vmem:[%s4] sm:$0xff]
        %v257 = vld [vmem:[%s2] sm:$0x3]
        %s258 = scalar_lea.vmem %s2, 2
        %v259 = vld [vmem:[%s258] sm:$0x3]
        %s260 = scalar_lea.vmem %s2, 4
        %v261 = vld [vmem:[%s260] sm:$0x3]
        %s262 = scalar_lea.vmem %s2, 6
        %v263 = vld [vmem:[%s262] sm:$0x3]
        %s264 = scalar_lea.vmem %s2, 8
        %v265 = vld [vmem:[%s264] sm:$0x3]
        %s266 = scalar_lea.vmem %s2, 10
        %v267 = vld [vmem:[%s266] sm:$0x3]
        %s268 = scalar_lea.vmem %s2, 12
        %v269 = vld [vmem:[%s268] sm:$0x3]
        %s270 = scalar_lea.vmem %s2, 14
        %v271 = vld [vmem:[%s270] sm:$0x3]
        %s272 = scalar_lea.vmem %s2, 16
        %v273 = vld [vmem:[%s272] sm:$0x3]
        %v274 = vld [vmem:[%s223] sm:$0xff]
        %v276 = vcombine.high %v274, %v274
        %278 = vrot.lane.b32.xlu0 %v274, 17
        %v279 = vpop.permute.xlu0 %278
        %280 = vrot.lane.b32.xlu0 %v276, 17
        %v281 = vpop.permute.xlu0 %280
        %v282 = vlaneseq
        %v283 = vand.u32 %v282, 127
        %vm284 = vcmp.lt.s32.totalorder %v283, 17
        %v285 = vsel %vm284, %v279, %v281
        %v286 = vsel %vm284, %v281, %v279
        %v288 = vlaneseq
        %v289 = vshrl.u32 %v288, 7
        %v290 = vsub.s32 0, %v289
        %v291 = vrot.slane %v257, %v290
        %v292 = vlaneseq
        %v293 = vshrl.u32 %v292, 7
        %v294 = vsub.s32 1, %v293
        %v295 = vrot.slane %v257, %v294
        %v298 = vmul.f32 %v286, %v291
        %v299 = vmul.f32 %v285, %v295
        %300 = vrot.lane.b32.xlu0 %v274, 16
        %v301 = vpop.permute.xlu0 %300
        %302 = vrot.lane.b32.xlu0 %v276, 16
        %v303 = vpop.permute.xlu0 %302
        %vm304 = vcmp.lt.s32.totalorder %v283, 16
        %v305 = vsel %vm304, %v301, %v303
        %v306 = vsel %vm304, %v303, %v301
        %v308 = vlaneseq
        %v309 = vshrl.u32 %v308, 7
        %v310 = vsub.s32 0, %v309
        %v311 = vrot.slane %v259, %v310
        %v312 = vlaneseq
        %v313 = vshrl.u32 %v312, 7
        %v314 = vsub.s32 1, %v313
        %v315 = vrot.slane %v259, %v314
        %v318 = vmul.f32 %v306, %v311
        %v319 = vmul.f32 %v305, %v315
        %320 = vrot.lane.b32.xlu0 %v274, 15
        %v321 = vpop.permute.xlu0 %320
        %322 = vrot.lane.b32.xlu0 %v276, 15
        %v323 = vpop.permute.xlu0 %322
        %vm324 = vcmp.lt.s32.totalorder %v283, 15
        %v325 = vsel %vm324, %v321, %v323
        %v326 = vsel %vm324, %v323, %v321
        %v328 = vlaneseq
        %v329 = vshrl.u32 %v328, 7
        %v330 = vsub.s32 0, %v329
        %v331 = vrot.slane %v261, %v330
        %v332 = vlaneseq
        %v333 = vshrl.u32 %v332, 7
        %v334 = vsub.s32 1, %v333
        %v335 = vrot.slane %v261, %v334
        %v338 = vmul.f32 %v326, %v331
        %v339 = vmul.f32 %v325, %v335
        %340 = vrot.lane.b32.xlu0 %v274, 1
        %v341 = vpop.permute.xlu0 %340
        %342 = vrot.lane.b32.xlu0 %v276, 1
        %v343 = vpop.permute.xlu0 %342
        %vm344 = vcmp.lt.s32.totalorder %v283, 1
        %v345 = vsel %vm344, %v341, %v343
        %v346 = vsel %vm344, %v343, %v341
        %v348 = vlaneseq
        %v349 = vshrl.u32 %v348, 7
        %v350 = vsub.s32 0, %v349
        %v351 = vrot.slane %v263, %v350
        %v352 = vlaneseq
        %v353 = vshrl.u32 %v352, 7
        %v354 = vsub.s32 1, %v353
        %v355 = vrot.slane %v263, %v354
        %v358 = vmul.f32 %v346, %v351
        %v359 = vmul.f32 %v345, %v355
        %v361 = vlaneseq
        %v362 = vshrl.u32 %v361, 7
        %v363 = vsub.s32 0, %v362
        %v364 = vrot.slane %v265, %v363
        %v365 = vlaneseq
        %v366 = vshrl.u32 %v365, 7
        %v367 = vsub.s32 1, %v366
        %v368 = vrot.slane %v265, %v367
        %v369 = vcombine.low %v364, %v368
        %v371 = vmul.f32 %v274, %v369
        %372 = vrot.lane.b32.xlu0 %v274, 127
        %v373 = vpop.permute.xlu0 %372
        %374 = vrot.lane.b32.xlu0 %v276, 127
        %v375 = vpop.permute.xlu0 %374
        %vm376 = vcmp.lt.s32.totalorder %v283, 127
        %v377 = vsel %vm376, %v373, %v375
        %v378 = vsel %vm376, %v375, %v373
        %v380 = vlaneseq
        %v381 = vshrl.u32 %v380, 7
        %v382 = vsub.s32 0, %v381
        %v383 = vrot.slane %v267, %v382
        %v384 = vlaneseq
        %v385 = vshrl.u32 %v384, 7
        %v386 = vsub.s32 1, %v385
        %v387 = vrot.slane %v267, %v386
        %v390 = vmul.f32 %v377, %v383
        %v391 = vmul.f32 %v378, %v387
        %392 = vrot.lane.b32.xlu0 %v274, 113
        %v393 = vpop.permute.xlu0 %392
        %394 = vrot.lane.b32.xlu0 %v276, 113
        %v395 = vpop.permute.xlu0 %394
        %vm396 = vcmp.lt.s32.totalorder %v283, 113
        %v397 = vsel %vm396, %v393, %v395
        %v398 = vsel %vm396, %v395, %v393
        %v400 = vlaneseq
        %v401 = vshrl.u32 %v400, 7
        %v402 = vsub.s32 0, %v401
        %v403 = vrot.slane %v269, %v402
        %v404 = vlaneseq
        %v405 = vshrl.u32 %v404, 7
        %v406 = vsub.s32 1, %v405
        %v407 = vrot.slane %v269, %v406
        %v410 = vmul.f32 %v397, %v403
        %v411 = vmul.f32 %v398, %v407
        %412 = vrot.lane.b32.xlu0 %v274, 112
        %v413 = vpop.permute.xlu0 %412
        %414 = vrot.lane.b32.xlu0 %v276, 112
        %v415 = vpop.permute.xlu0 %414
        %vm416 = vcmp.lt.s32.totalorder %v283, 112
        %v417 = vsel %vm416, %v413, %v415
        %v418 = vsel %vm416, %v415, %v413
        %v420 = vlaneseq
        %v421 = vshrl.u32 %v420, 7
        %v422 = vsub.s32 0, %v421
        %v423 = vrot.slane %v271, %v422
        %v424 = vlaneseq
        %v425 = vshrl.u32 %v424, 7
        %v426 = vsub.s32 1, %v425
        %v427 = vrot.slane %v271, %v426
        %v430 = vmul.f32 %v417, %v423
        %v431 = vmul.f32 %v418, %v427
        %432 = vrot.lane.b32.xlu0 %v274, 111
        %v433 = vpop.permute.xlu0 %432
        %434 = vrot.lane.b32.xlu0 %v276, 111
        %v435 = vpop.permute.xlu0 %434
        %vm436 = vcmp.lt.s32.totalorder %v283, 111
        %v437 = vsel %vm436, %v433, %v435
        %v438 = vsel %vm436, %v435, %v433
        %v440 = vlaneseq
        %v441 = vshrl.u32 %v440, 7
        %v442 = vsub.s32 0, %v441
        %v443 = vrot.slane %v273, %v442
        %v444 = vlaneseq
        %v445 = vshrl.u32 %v444, 7
        %v446 = vsub.s32 1, %v445
        %v447 = vrot.slane %v273, %v446
        %v450 = vmul.f32 %v437, %v443
        %v451 = vmul.f32 %v438, %v447
        %v454 = vrot.slane %v318, 4
        %v455 = vrot.slane %v319, 4
        %v460 = vrot.slane %v358, 4
        %v461 = vrot.slane %v359, 4
        %v465 = vcombine.high %v371, %v371
        %v469 = vrot.slane %v390, 4
        %v470 = vrot.slane %v391, 4
        %v475 = vrot.slane %v430, 4
        %v476 = vrot.slane %v431, 4
        %vm479 = vcmask 1043456
        %v480 = vsel %vm479, %v298, %v454
        %v481 = vsel %vm479, %v299, %v455
        %v482 = vsel %vm479, %v338, %v460
        %v483 = vsel %vm479, %v339, %v461
        %v484 = vsel %vm479, %v371, %v469
        %v485 = vsel %vm479, %v465, %v470
        %v486 = vsel %vm479, %v410, %v475
        %v487 = vsel %vm479, %v411, %v476
        %vm488 = vcmask 293888
        %v490 = vsel %vm488, %v254, 0
        %v493 = vsel %vm479, %v450, 0
        %v496 = vsel %vm479, %v451, 0
        %498 = vmatprep.subr.mxu0 %v481
        %499 = vmatpush1.msra.mxu0 %v480
        %500 = vmatprep.subr.mxu0 %v483
        %501 = vmatpush1.msra.mxu0 %v482
        %502 = vmatprep.subr.mxu0 %v485
        %503 = vmatpush1.msra.mxu0 %v484
        %504 = vmatprep.subr.mxu0 %v487
        %505 = vmatpush1.msra.mxu0 %v486
        %506 = vmatprep.subr.mxu0 %v496
        %507 = vmatpush1.msra.mxu0 %v493
        %508 = vmatprep.subr.mxu0 0.0
        %509 = vmatpush1.msra.mxu0 0.0
        %510 = vmatprep.subr.mxu0 0.0
        %511 = vmatpush1.msra.mxu0 0.0
        %512 = vmatprep.subr.mxu0 0.0
        %513 = vmatpush1.msra.mxu0 0.0
        %514 = vmatprep.subr.mxu0 0.0
        %515 = vmatpush1.msra.mxu0 0.0
        %516 = vmatprep.subr.mxu0 0.0
        %517 = vmatpush1.msra.mxu0 0.0
        %518 = vmatprep.subr.mxu0 0.0
        %519 = vmatpush1.msra.mxu0 0.0
        %520 = vmatprep.subr.mxu0 0.0
        %521 = vmatpush1.msra.mxu0 0.0
        %522 = vmatprep.subr.mxu0 0.0
        %523 = vmatpush1.msra.mxu0 0.0
        %524 = vmatprep.subr.mxu0 0.0
        %525 = vmatpush1.msra.mxu0 0.0
        %526 = vmatprep.subr.mxu0 0.0
        %527 = vmatpush1.msra.mxu0 0.0
        %528 = vmatprep.subr.mxu0 0.0
        %529 = vmatpush1.msra.mxu0 0.0
        %530 = vmatprep.subr.mxu0 0.0
        %531 = vmatpush1.msra.mxu0 0.0
        %532 = vmatprep.subr.mxu0 0.0
        %533 = vmatpush1.msra.mxu0 0.0
        %534 = vmatprep.subr.mxu0 0.0
        %535 = vmatpush1.msra.mxu0 0.0
        %536 = vmatprep.subr.mxu0 0.0
        %537 = vmatpush1.msra.mxu0 0.0
        %538 = vmatprep.subr.mxu0 0.0
        %539 = vmatpush1.msra.mxu0 0.0
        %540 = vmatprep.subr.mxu0 0.0
        %541 = vmatpush1.msra.mxu0 0.0
        %542 = vmatprep.subr.mxu0 0.0
        %543 = vmatpush1.msra.mxu0 0.0
        %544 = vmatprep.subr.mxu0 0.0
        %545 = vmatpush1.msra.mxu0 0.0
        %546 = vmatprep.subr.mxu0 0.0
        %547 = vmatpush1.msra.mxu0 0.0
        %548 = vmatprep.subr.mxu0 0.0
        %549 = vmatpush1.msra.mxu0 0.0
        %550 = vmatprep.subr.mxu0 0.0
        %551 = vmatpush1.msra.mxu0 0.0
        %552 = vmatprep.subr.mxu0 0.0
        %553 = vmatpush1.msra.mxu0 0.0
        %554 = vmatprep.subr.mxu0 0.0
        %555 = vmatpush1.msra.mxu0 0.0
        %556 = vmatprep.subr.mxu0 0.0
        %557 = vmatpush1.msra.mxu0 0.0
        %558 = vmatprep.subr.mxu0 0.0
        %559 = vmatpush1.msra.mxu0 0.0
        %560 = vmatprep.subr.mxu0 0.0
        %561 = vmatpush1.msra.mxu0 0.0
        %562 = vmatprep.mubr.f32.mxu0 0.0
        %563 = vmatmul.mubr.f32.gmra.mrb[0].mxu0 %v490
        %v564 = vpop.f32.mrb[0].mxu0
        %v565 = vadd.f32 0.0, %v564
        %v566 = vpop.f32.mrb[0].mxu0
        %v567 = vadd.f32 0.0, %v566
        %568 = vdwg.mxu0
        %570 = vset.pattern.permute.xlu0 0
        %571 = vperm.xlu0 %570, %v255
        %v572 = vpop.permute.xlu0 %571
        %v574 = vmul.f32 %v565, %v572
        %v575 = vmul.f32 %v567, %v572
        %577 = vset.pattern.permute.xlu0 0
        %578 = vperm.xlu0 %577, %v256
        %v579 = vpop.permute.xlu0 %578
        %v581 = vadd.f32 %v574, %v579
        %v582 = vadd.f32 %v575, %v579
        %v583 = vmax.f32 %v581, 0.0
        %v584 = vmax.f32 %v582, 0.0
        %585 = vst [vmem:[%s253] sm:$0xff] %v583
        %586 = vst [vmem:[%s253 + $0x8] sm:$0xff] %v584
        %s587 = sand.u32 %s141, 1
        %s588 = scalar_lea.sflag [#allocation4], %s587
        %s589 = sand.u32 %s141, 1
        %s590 = smul.addr %s589, 16
        %s591 = scalar_lea.vmem [#allocation7], %s590
        // Predicated region
        $region49: #{tpu_custom_call.1} parent=39 // pred_check
          %p592 = pneg %p151
        $region50: #{tpu_custom_call.1} parent=39 // pred_check_branch
          %594 = sbr.rel (%p592) target = $region52
        $region51: #{tpu_custom_call.1} parent=39 // pred_region
          %s596 = ssub.s32 256, 256
          %597 = vsyncadd %s588, %s596
          %s598 = smul.addr %s23, 2
          %s599 = smul.addr %s598, 128
          %s600 = scalar_lea.hbm %s5, %s599
          %s602 = sshll.u32 %s591, 4
          %s603 = int_to_ptr.vmem [resolvable:$true] %s602
          %605 = dma.vmem_to_hbm [thread:$0]  %s603, 256, %s600, %s588
        $region52: #{tpu_custom_call.1} parent=39 // pred_fallthru
          _
      $region40: #{tpu_custom_call.1} parent=5 // pred_fallthru
        _
      %p606 = scmp.le.s32.totalorder 2, %s18
      // Predicated region
      $region53: #{tpu_custom_call.1} parent=5 // pred_check
        %p607 = pneg %p606
      $region54: #{tpu_custom_call.1} parent=5 // pred_check_branch
        %609 = sbr.rel (%p607) target = $region56
      $region55: #{tpu_custom_call.1} parent=5 // pred_region
        %s610 = ssub.s32 %s18, 2
        // Predicated region
        $region57: #{tpu_custom_call.1} parent=55 // pred_check
          %p611 = pneg %p157
        $region58: #{tpu_custom_call.1} parent=55 // pred_check_branch
          %613 = sbr.rel (%p611) target = $region60
        $region59: #{tpu_custom_call.1} parent=55 // pred_region
          %s614 = sand.u32 %s142, 1
          %s615 = scalar_lea.sflag [#allocation4], %s614
          %s616 = sand.u32 %s142, 1
          %s617 = smul.addr %s616, 16
          %s618 = scalar_lea.vmem [#allocation7], %s617
          %619 = dma.done %s615, 256
        $region60: #{tpu_custom_call.1} parent=55 // pred_fallthru
          _
      $region56: #{tpu_custom_call.1} parent=5 // pred_fallthru
        _
    $region6: #{tpu_custom_call.1} parent=1 // loop_footer
      %s22 = sadd.s32 1, %s18
    $region7: #{tpu_custom_call.1} parent=1 // loop_footer_branch
      %17 = sbr.rel target = $region3
    $region8: #{tpu_custom_call.1} parent=1 // loop_exit
      _
    %620 = vsyncpa [#allocation3], 1
    %s621 = scalar_lea.sflag [#allocation3], 1
    %622 = vsyncpa %s621, 1
    %623 = vsyncpa [#allocation6], 1
    %624 = vsyncpa [#allocation4], 1
    %s625 = scalar_lea.sflag [#allocation4], 1
    %626 = vsyncpa %s625, 1

</llo_original>
